<compile_context>
chip_gen: v7x
topology: tpu7x:2x2x1
jax: 0.10.0
libtpu: 0.0.40
codegen_flags: <defaults>
</compile_context>

<pallas_src>
import functools

import jax
import jax.numpy as jnp
from jax.experimental import pallas as pl
from jax.experimental.pallas import tpu as pltpu

_LANE = 128
_MAX_TILE_ROWS = 4096          # 4096 rows * 128 lanes * 4 B = 2 MiB f32 block


def _round_up(v, m):
    return ((v + m - 1) // m) * m


def _combo_partials_kernel(x_ref, t_ref, out_ref,
                           inter_acc, x_acc, t_acc, ce_acc,
                           *, alpha, n_valid, tile_elems, need_mask,
                           binary_targets):
    k = pl.program_id(1)

    @pl.when(k == 0)
    def _init():
        inter_acc[...] = jnp.zeros_like(inter_acc)
        x_acc[...] = jnp.zeros_like(x_acc)
        t_acc[...] = jnp.zeros_like(t_acc)
        ce_acc[...] = jnp.zeros_like(ce_acc)

    x = x_ref[...].astype(jnp.float32)          # (tile_rows, 128)
    t = t_ref[...].astype(jnp.float32)          # (tile_rows, 128)

    # Dice partial sums (reduce the sublane-packed row axis, keep lanes).
    inter_acc[...] += jnp.sum(x * t, axis=0, keepdims=True)
    x_acc[...] += jnp.sum(x, axis=0, keepdims=True)
    t_acc[...] += jnp.sum(t, axis=0, keepdims=True)

    # Weighted cross-entropy partial sum.
    eps = 1e-07
    xc = jnp.clip(x, eps, 1.0 - eps)
    if binary_targets:
        # Hard 0/1 masks only: one log per element (EUP relief on v7x).
        is_pos = t >= 0.5
        w = jnp.where(is_pos, alpha, alpha * (1.0 - alpha))
        ce = -w * jnp.log(jnp.where(is_pos, xc, 1.0 - xc))
    else:
        ce = -(alpha * (t * jnp.log(xc)
                        + (1.0 - alpha) * (1.0 - t) * jnp.log(1.0 - xc)))

    if need_mask:
        rows, lanes = x.shape
        flat_idx = (k * tile_elems
                    + jax.lax.broadcasted_iota(jnp.int32, (rows, lanes), 0) * lanes
                    + jax.lax.broadcasted_iota(jnp.int32, (rows, lanes), 1))
        ce = jnp.where(flat_idx < n_valid, ce, 0.0)

    ce_acc[...] += jnp.sum(ce, axis=0, keepdims=True)

    @pl.when(k == pl.num_programs(1) - 1)
    def _finalize():
        out_ref[0:1, :] = inter_acc[...]
        out_ref[1:2, :] = x_acc[...]
        out_ref[2:3, :] = t_acc[...]
        out_ref[3:4, :] = ce_acc[...]
        out_ref[4:8, :] = jnp.zeros((4, _LANE), jnp.float32)


def combo_loss(inputs, targets, *, alpha=0.5, ce_ratio=0.5,
               reduce_samples=True, smooth=1.0, binary_targets=False):
    """Matches ComboLoss.forward semantics (inputs are probabilities)."""
    b = inputs.shape[0]
    x = inputs.reshape(b, -1)          # keep native dtype; cast inside kernel
    t = targets.reshape(b, -1)
    n = x.shape[1]

    # Choose a reduction tile: rows of 128 lanes, tile_rows a multiple of 32
    # (valid sublane packing for f32/bf16/int8), ~2 MiB per f32 block, and
    # padding minimized by distributing rows evenly over the k-tiles.
    rows = -(-n // _LANE)                               # cdiv(n, 128)
    num_k = max(1, -(-rows // _MAX_TILE_ROWS))          # number of k tiles
    tile_rows = _round_up(-(-rows // num_k), 32)
    rows_pad = tile_rows * num_k
    n_pad = rows_pad * _LANE
    need_mask = (n_pad != n)

    if need_mask:
        x = jnp.pad(x, ((0, 0), (0, n_pad - n)))
        t = jnp.pad(t, ((0, 0), (0, n_pad - n)))
    x = x.reshape(b, rows_pad, _LANE)
    t = t.reshape(b, rows_pad, _LANE)

    kernel = functools.partial(
        _combo_partials_kernel,
        alpha=float(alpha), n_valid=n, tile_elems=tile_rows * _LANE,
        need_mask=need_mask, binary_targets=bool(binary_targets))

    bytes_accessed = int(x.size * x.dtype.itemsize
                         + t.size * t.dtype.itemsize
                         + b * 8 * _LANE * 4)
    cost = pl.CostEstimate(flops=int(8 * b * n),
                           transcendentals=int(2 * b * n),
                           bytes_accessed=bytes_accessed)

    partials = pl.pallas_call(
        kernel,
        out_shape=jax.ShapeDtypeStruct((b, 8, _LANE), jnp.float32),
        grid_spec=pltpu.PrefetchScalarGridSpec(
            num_scalar_prefetch=0,
            grid=(b, num_k),
            in_specs=[
                pl.BlockSpec((None, tile_rows, _LANE), lambda bi, k: (bi, k, 0)),
                pl.BlockSpec((None, tile_rows, _LANE), lambda bi, k: (bi, k, 0)),
            ],
            out_specs=pl.BlockSpec((None, 8, _LANE), lambda bi, k: (bi, 0, 0)),
            scratch_shapes=[pltpu.VMEM((1, _LANE), jnp.float32)] * 4,
        ),
        compiler_params=pltpu.CompilerParams(
            dimension_semantics=("parallel", "arbitrary")),
        cost_estimate=cost,
    )(x, t)

    # Tiny final combine in plain JAX (dice is global over the whole batch,
    # CE mean is per-sample -- matches the PyTorch reference exactly).
    inter = jnp.sum(partials[:, 0, :])
    x_sum = jnp.sum(partials[:, 1, :])
    t_sum = jnp.sum(partials[:, 2, :])
    ce_sum_b = jnp.sum(partials[:, 3, :], axis=-1)      # (B,)

    dice = (2.0 * inter + smooth) / (x_sum + t_sum + smooth)
    weighted_ce = ce_sum_b / n
    combo = ce_ratio * weighted_ce - (1.0 - ce_ratio) * dice
    return jnp.mean(combo) if reduce_samples else combo


def _combo_loss_ref(inputs, targets, alpha=0.5, ce_ratio=0.5,
                    reduce_samples=True, smooth=1.0):
    e = 1e-07
    b = inputs.shape[0]
    x = inputs.reshape(b, -1).astype(jnp.float32)
    t = targets.reshape(b, -1).astype(jnp.float32)
    intersection = jnp.sum(x * t)
    dice = (2.0 * intersection + smooth) / (jnp.sum(x) + jnp.sum(t) + smooth)
    xc = jnp.clip(x, e, 1.0 - e)
    out = -(alpha * (t * jnp.log(xc)
                     + (1.0 - alpha) * (1.0 - t) * jnp.log(1.0 - xc)))
    weighted_ce = jnp.mean(out, axis=-1)
    combo = ce_ratio * weighted_ce - (1.0 - ce_ratio) * dice
    return jnp.mean(combo) if reduce_samples else combo


if __name__ == "__main__":
    key = jax.random.PRNGKey(0)
    k1, k2 = jax.random.split(key)

    # Small shapes consistent with a segmentation-style usage: NCHW probs/masks.
    B, C, H, W = 2, 4, 16, 16
    logits = jax.random.normal(k1, (B, C, H, W), dtype=jnp.float32)
    inputs = jax.nn.sigmoid(logits)                               # probabilities
    targets = (jax.random.uniform(k2, (B, C, H, W)) > 0.5).astype(jnp.float32)

    loss = jax.block_until_ready(combo_loss(inputs, targets, reduce_samples=True))
    ref = _combo_loss_ref(inputs, targets, reduce_samples=True)
    assert jnp.allclose(loss, ref, rtol=1e-5, atol=1e-6), (loss, ref)

    per_sample = jax.block_until_ready(
        combo_loss(inputs, targets, reduce_samples=False))
    ref_ps = _combo_loss_ref(inputs, targets, reduce_samples=False)
    assert jnp.allclose(per_sample, ref_ps, rtol=1e-5, atol=1e-6)

    # Optional single-log path (valid only for hard 0/1 masks).
    loss_bin = jax.block_until_ready(
        combo_loss(inputs, targets, reduce_samples=True, binary_targets=True))
    assert jnp.allclose(loss_bin, ref, rtol=1e-5, atol=1e-5), (loss_bin, ref)

    print("KERNEL_OK")
</pallas_src>

<mosaic_0001>
module attributes {stable_mosaic.version = 11 : i64} {
  func.func @_combo_partials_kernel(%arg0: i32, %arg1: i32, %arg2: memref<1x32x128xf32, #tpu.memory_space<vmem>>, %arg3: memref<1x32x128xf32, #tpu.memory_space<vmem>>, %arg4: memref<1x8x128xf32, #tpu.memory_space<vmem>>, %arg5: memref<1x128xf32, #tpu.memory_space<vmem>>, %arg6: memref<1x128xf32, #tpu.memory_space<vmem>>, %arg7: memref<1x128xf32, #tpu.memory_space<vmem>>, %arg8: memref<1x128xf32, #tpu.memory_space<vmem>>) attributes {dimension_semantics = [#tpu.dimension_semantics<parallel>, #tpu.dimension_semantics<arbitrary>], iteration_bounds = array<i64: 2, 1>, scalar_prefetch = 0 : i64, scratch_operands = 4 : i64, tpu.core_type = #tpu.core_type<tc>, window_params = [{transform_indices = @transform_0, window_bounds = array<i64: 1, 32, 128>}, {transform_indices = @transform_1, window_bounds = array<i64: 1, 32, 128>}, {transform_indices = @transform_2, window_bounds = array<i64: 1, 8, 128>}]} {
    %c0_i32 = arith.constant 0 : i32
    %0 = arith.cmpi eq, %arg1, %c0_i32 : i32
    %1 = arith.extui %0 : i1 to i32
    %c0_i32_0 = arith.constant 0 : i32
    %2 = arith.cmpi ne, %1, %c0_i32_0 : i32
    scf.if %2 {
      %cst_35 = arith.constant 0.000000e+00 : f32
      %62 = vector.broadcast %cst_35 : f32 to vector<1x128xf32>
      %c0_36 = arith.constant 0 : index
      %c0_37 = arith.constant 0 : index
      %63 = vector.load %arg5[%c0_36, %c0_37] : memref<1x128xf32, #tpu.memory_space<vmem>>, vector<1x128xf32>
      tpu.vector_store %arg5[%c0_36, %c0_37], %62 {strides = array<i32>} : memref<1x128xf32, #tpu.memory_space<vmem>>, vector<1x128xf32>,
      %cst_38 = arith.constant 0.000000e+00 : f32
      %64 = vector.broadcast %cst_38 : f32 to vector<1x128xf32>
      %c0_39 = arith.constant 0 : index
      %c0_40 = arith.constant 0 : index
      %65 = vector.load %arg6[%c0_39, %c0_40] : memref<1x128xf32, #tpu.memory_space<vmem>>, vector<1x128xf32>
      tpu.vector_store %arg6[%c0_39, %c0_40], %64 {strides = array<i32>} : memref<1x128xf32, #tpu.memory_space<vmem>>, vector<1x128xf32>,
      %cst_41 = arith.constant 0.000000e+00 : f32
      %66 = vector.broadcast %cst_41 : f32 to vector<1x128xf32>
      %c0_42 = arith.constant 0 : index
      %c0_43 = arith.constant 0 : index
      %67 = vector.load %arg7[%c0_42, %c0_43] : memref<1x128xf32, #tpu.memory_space<vmem>>, vector<1x128xf32>
      tpu.vector_store %arg7[%c0_42, %c0_43], %66 {strides = array<i32>} : memref<1x128xf32, #tpu.memory_space<vmem>>, vector<1x128xf32>,
      %cst_44 = arith.constant 0.000000e+00 : f32
      %68 = vector.broadcast %cst_44 : f32 to vector<1x128xf32>
      %c0_45 = arith.constant 0 : index
      %c0_46 = arith.constant 0 : index
      %69 = vector.load %arg8[%c0_45, %c0_46] : memref<1x128xf32, #tpu.memory_space<vmem>>, vector<1x128xf32>
      tpu.vector_store %arg8[%c0_45, %c0_46], %68 {strides = array<i32>} : memref<1x128xf32, #tpu.memory_space<vmem>>, vector<1x128xf32>,
    } else {
    }
    %c0 = arith.constant 0 : index
    %c0_1 = arith.constant 0 : index
    %c0_2 = arith.constant 0 : index
    %3 = vector.load %arg2[%c0, %c0_1, %c0_2] : memref<1x32x128xf32, #tpu.memory_space<vmem>>, vector<1x32x128xf32>
    %4 = vector.shape_cast %3 : vector<1x32x128xf32> to vector<32x128xf32>
    %c0_3 = arith.constant 0 : index
    %c0_4 = arith.constant 0 : index
    %c0_5 = arith.constant 0 : index
    %5 = vector.load %arg3[%c0_3, %c0_4, %c0_5] : memref<1x32x128xf32, #tpu.memory_space<vmem>>, vector<1x32x128xf32>
    %6 = vector.shape_cast %5 : vector<1x32x128xf32> to vector<32x128xf32>
    %c0_6 = arith.constant 0 : index
    %c0_7 = arith.constant 0 : index
    %7 = vector.load %arg5[%c0_6, %c0_7] : memref<1x128xf32, #tpu.memory_space<vmem>>, vector<1x128xf32>
    %8 = arith.mulf %4, %6 : vector<32x128xf32>
    %cst = arith.constant dense<0.000000e+00> : vector<128xf32>
    %9 = vector.multi_reduction <add>, %8, %cst [0] : vector<32x128xf32> to vector<128xf32>
    %10 = vector.shape_cast %9 : vector<128xf32> to vector<1x128xf32>
    %11 = arith.addf %7, %10 : vector<1x128xf32>
    %c0_8 = arith.constant 0 : index
    %c0_9 = arith.constant 0 : index
    %12 = vector.load %arg5[%c0_8, %c0_9] : memref<1x128xf32, #tpu.memory_space<vmem>>, vector<1x128xf32>
    tpu.vector_store %arg5[%c0_8, %c0_9], %11 {strides = array<i32>} : memref<1x128xf32, #tpu.memory_space<vmem>>, vector<1x128xf32>,
    %c0_10 = arith.constant 0 : index
    %c0_11 = arith.constant 0 : index
    %13 = vector.load %arg6[%c0_10, %c0_11] : memref<1x128xf32, #tpu.memory_space<vmem>>, vector<1x128xf32>
    %cst_12 = arith.constant dense<0.000000e+00> : vector<128xf32>
    %14 = vector.multi_reduction <add>, %4, %cst_12 [0] : vector<32x128xf32> to vector<128xf32>
    %15 = vector.shape_cast %14 : vector<128xf32> to vector<1x128xf32>
    %16 = arith.addf %13, %15 : vector<1x128xf32>
    %c0_13 = arith.constant 0 : index
    %c0_14 = arith.constant 0 : index
    %17 = vector.load %arg6[%c0_13, %c0_14] : memref<1x128xf32, #tpu.memory_space<vmem>>, vector<1x128xf32>
    tpu.vector_store %arg6[%c0_13, %c0_14], %16 {strides = array<i32>} : memref<1x128xf32, #tpu.memory_space<vmem>>, vector<1x128xf32>,
    %c0_15 = arith.constant 0 : index
    %c0_16 = arith.constant 0 : index
    %18 = vector.load %arg7[%c0_15, %c0_16] : memref<1x128xf32, #tpu.memory_space<vmem>>, vector<1x128xf32>
    %cst_17 = arith.constant dense<0.000000e+00> : vector<128xf32>
    %19 = vector.multi_reduction <add>, %6, %cst_17 [0] : vector<32x128xf32> to vector<128xf32>
    %20 = vector.shape_cast %19 : vector<128xf32> to vector<1x128xf32>
    %21 = arith.addf %18, %20 : vector<1x128xf32>
    %c0_18 = arith.constant 0 : index
    %c0_19 = arith.constant 0 : index
    %22 = vector.load %arg7[%c0_18, %c0_19] : memref<1x128xf32, #tpu.memory_space<vmem>>, vector<1x128xf32>
    tpu.vector_store %arg7[%c0_18, %c0_19], %21 {strides = array<i32>} : memref<1x128xf32, #tpu.memory_space<vmem>>, vector<1x128xf32>,
    %cst_20 = arith.constant 1.000000e-07 : f32
    %cst_21 = arith.constant 0.99999988 : f32
    %23 = vector.broadcast %cst_20 : f32 to vector<32x128xf32>
    %24 = arith.maximumf %23, %4 : vector<32x128xf32>
    %25 = vector.broadcast %cst_21 : f32 to vector<32x128xf32>
    %26 = arith.minimumf %25, %24 : vector<32x128xf32>
    %27 = math.log %26 : vector<32x128xf32>
    %28 = arith.mulf %6, %27 : vector<32x128xf32>
    %cst_22 = arith.constant 1.000000e+00 : f32
    %29 = vector.broadcast %cst_22 : f32 to vector<32x128xf32>
    %30 = arith.subf %29, %6 : vector<32x128xf32>
    %cst_23 = arith.constant 5.000000e-01 : f32
    %31 = vector.broadcast %cst_23 : f32 to vector<32x128xf32>
    %32 = arith.mulf %31, %30 : vector<32x128xf32>
    %cst_24 = arith.constant 1.000000e+00 : f32
    %33 = vector.broadcast %cst_24 : f32 to vector<32x128xf32>
    %34 = arith.subf %33, %26 : vector<32x128xf32>
    %35 = math.log %34 : vector<32x128xf32>
    %36 = arith.mulf %32, %35 : vector<32x128xf32>
    %37 = arith.addf %28, %36 : vector<32x128xf32>
    %cst_25 = arith.constant 5.000000e-01 : f32
    %38 = vector.broadcast %cst_25 : f32 to vector<32x128xf32>
    %39 = arith.mulf %38, %37 : vector<32x128xf32>
    %cst_26 = arith.constant 0.000000e+00 : f32
    %40 = vector.broadcast %cst_26 : f32 to vector<32x128xf32>
    %41 = arith.subf %40, %39 : vector<32x128xf32>
    %c4096_i32 = arith.constant 4096 : i32
    %42 = arith.muli %arg1, %c4096_i32 : i32
    %43 = tpu.iota {dimensions = array<i32: 0>} : vector<32x128xi32>
    %c128_i32 = arith.constant 128 : i32
    %44 = vector.broadcast %c128_i32 : i32 to vector<32x128xi32>
    %45 = arith.muli %43, %44 : vector<32x128xi32>
    %46 = vector.broadcast %42 : i32 to vector<32x128xi32>
    %47 = arith.addi %46, %45 : vector<32x128xi32>
    %48 = tpu.iota {dimensions = array<i32: 1>} : vector<32x128xi32>
    %49 = arith.addi %47, %48 : vector<32x128xi32>
    %c1024_i32 = arith.constant 1024 : i32
    %50 = vector.broadcast %c1024_i32 : i32 to vector<32x128xi32>
    %51 = arith.cmpi slt, %49, %50 : vector<32x128xi32>
    %cst_27 = arith.constant 0.000000e+00 : f32
    %52 = vector.broadcast %cst_27 : f32 to vector<32x128xf32>
    %53 = arith.select %51, %41, %52 : vector<32x128xi1>, vector<32x128xf32>
    %c0_28 = arith.constant 0 : index
    %c0_29 = arith.constant 0 : index
    %54 = vector.load %arg8[%c0_28, %c0_29] : memref<1x128xf32, #tpu.memory_space<vmem>>, vector<1x128xf32>
    %cst_30 = arith.constant dense<0.000000e+00> : vector<128xf32>
    %55 = vector.multi_reduction <add>, %53, %cst_30 [0] : vector<32x128xf32> to vector<128xf32>
    %56 = vector.shape_cast %55 : vector<128xf32> to vector<1x128xf32>
    %57 = arith.addf %54, %56 : vector<1x128xf32>
    %c0_31 = arith.constant 0 : index
    %c0_32 = arith.constant 0 : index
    %58 = vector.load %arg8[%c0_31, %c0_32] : memref<1x128xf32, #tpu.memory_space<vmem>>, vector<1x128xf32>
    tpu.vector_store %arg8[%c0_31, %c0_32], %57 {strides = array<i32>} : memref<1x128xf32, #tpu.memory_space<vmem>>, vector<1x128xf32>,
    %c0_i32_33 = arith.constant 0 : i32
    %59 = arith.cmpi eq, %arg1, %c0_i32_33 : i32
    %60 = arith.extui %59 : i1 to i32
    %c0_i32_34 = arith.constant 0 : i32
    %61 = arith.cmpi ne, %60, %c0_i32_34 : i32
    scf.if %61 {
      %c0_35 = arith.constant 0 : index
      %c0_36 = arith.constant 0 : index
      %62 = vector.load %arg5[%c0_35, %c0_36] : memref<1x128xf32, #tpu.memory_space<vmem>>, vector<1x128xf32>
      %c0_37 = arith.constant 0 : index
      %c0_38 = arith.constant 0 : index
      %c0_39 = arith.constant 0 : index
      %63 = vector.load %arg4[%c0_37, %c0_38, %c0_39] : memref<1x8x128xf32, #tpu.memory_space<vmem>>, vector<1x1x128xf32>
      %64 = vector.shape_cast %63 : vector<1x1x128xf32> to vector<1x128xf32>
      %65 = vector.shape_cast %62 : vector<1x128xf32> to vector<1x1x128xf32>
      tpu.vector_store %arg4[%c0_37, %c0_38, %c0_39], %65 {strides = array<i32>} : memref<1x8x128xf32, #tpu.memory_space<vmem>>, vector<1x1x128xf32>,
      %c0_40 = arith.constant 0 : index
      %c0_41 = arith.constant 0 : index
      %66 = vector.load %arg6[%c0_40, %c0_41] : memref<1x128xf32, #tpu.memory_space<vmem>>, vector<1x128xf32>
      %c0_42 = arith.constant 0 : index
      %c1 = arith.constant 1 : index
      %c0_43 = arith.constant 0 : index
      %67 = vector.load %arg4[%c0_42, %c1, %c0_43] : memref<1x8x128xf32, #tpu.memory_space<vmem>>, vector<1x1x128xf32>
      %68 = vector.shape_cast %67 : vector<1x1x128xf32> to vector<1x128xf32>
      %69 = vector.shape_cast %66 : vector<1x128xf32> to vector<1x1x128xf32>
      tpu.vector_store %arg4[%c0_42, %c1, %c0_43], %69 {strides = array<i32>} : memref<1x8x128xf32, #tpu.memory_space<vmem>>, vector<1x1x128xf32>,
      %c0_44 = arith.constant 0 : index
      %c0_45 = arith.constant 0 : index
      %70 = vector.load %arg7[%c0_44, %c0_45] : memref<1x128xf32, #tpu.memory_space<vmem>>, vector<1x128xf32>
      %c0_46 = arith.constant 0 : index
      %c2 = arith.constant 2 : index
      %c0_47 = arith.constant 0 : index
      %71 = vector.load %arg4[%c0_46, %c2, %c0_47] : memref<1x8x128xf32, #tpu.memory_space<vmem>>, vector<1x1x128xf32>
      %72 = vector.shape_cast %71 : vector<1x1x128xf32> to vector<1x128xf32>
      %73 = vector.shape_cast %70 : vector<1x128xf32> to vector<1x1x128xf32>
      tpu.vector_store %arg4[%c0_46, %c2, %c0_47], %73 {strides = array<i32>} : memref<1x8x128xf32, #tpu.memory_space<vmem>>, vector<1x1x128xf32>,
      %c0_48 = arith.constant 0 : index
      %c0_49 = arith.constant 0 : index
      %74 = vector.load %arg8[%c0_48, %c0_49] : memref<1x128xf32, #tpu.memory_space<vmem>>, vector<1x128xf32>
      %c0_50 = arith.constant 0 : index
      %c3 = arith.constant 3 : index
      %c0_51 = arith.constant 0 : index
      %75 = vector.load %arg4[%c0_50, %c3, %c0_51] : memref<1x8x128xf32, #tpu.memory_space<vmem>>, vector<1x1x128xf32>
      %76 = vector.shape_cast %75 : vector<1x1x128xf32> to vector<1x128xf32>
      %77 = vector.shape_cast %74 : vector<1x128xf32> to vector<1x1x128xf32>
      tpu.vector_store %arg4[%c0_50, %c3, %c0_51], %77 {strides = array<i32>} : memref<1x8x128xf32, #tpu.memory_space<vmem>>, vector<1x1x128xf32>,
      %cst_52 = arith.constant 0.000000e+00 : f32
      %78 = vector.broadcast %cst_52 : f32 to vector<4x128xf32>
      %c0_53 = arith.constant 0 : index
      %c4 = arith.constant 4 : index
      %c0_54 = arith.constant 0 : index
      %79 = vector.load %arg4[%c0_53, %c4, %c0_54] : memref<1x8x128xf32, #tpu.memory_space<vmem>>, vector<1x4x128xf32>
      %80 = vector.shape_cast %79 : vector<1x4x128xf32> to vector<4x128xf32>
      %81 = vector.shape_cast %78 : vector<4x128xf32> to vector<1x4x128xf32>
      tpu.vector_store %arg4[%c0_53, %c4, %c0_54], %81 {strides = array<i32>} : memref<1x8x128xf32, #tpu.memory_space<vmem>>, vector<1x4x128xf32>,
    } else {
    }
    return
  }
  func.func @transform_0(%arg0: i32, %arg1: i32) -> (i32, i32, i32) {
    %c0_i32 = arith.constant 0 : i32
    %c0_i32_0 = arith.constant 0 : i32
    return %arg0, %arg1, %c0_i32 : i32, i32, i32
  }
  func.func @transform_1(%arg0: i32, %arg1: i32) -> (i32, i32, i32) {
    %c0_i32 = arith.constant 0 : i32
    %c0_i32_0 = arith.constant 0 : i32
    return %arg0, %arg1, %c0_i32 : i32, i32, i32
  }
  func.func @transform_2(%arg0: i32, %arg1: i32) -> (i32, i32, i32) {
    %c0_i32 = arith.constant 0 : i32
    %c0_i32_0 = arith.constant 0 : i32
    %c0_i32_1 = arith.constant 0 : i32
    return %arg0, %c0_i32, %c0_i32_0 : i32, i32, i32
  }
}

</mosaic_0001>

<llo_original>
// kernel: tpu_custom_call.1
$region0: #{tpu_custom_call.1}
  #allocation0 [shape = 'u32[]', space=smem, size = 0x4, offset = 0x4, fixed_abs, tag = 'smem constant byte address 0x4 - core index']
  #allocation1 [shape = 'u32[144,128]{1,0:T(1,128)}', space=vmem, size = 0x12000, scoped, tag = 'internal scratch']
  #allocation2 [shape = 'f32[1,128]{1,0:T(1,128)}', space=vmem, size = 0x200, scoped, tag = 'scratch operand']
  #allocation3 [shape = 'f32[1,128]{1,0:T(1,128)}', space=vmem, size = 0x200, scoped, tag = 'scratch operand']
  #allocation4 [shape = 'f32[1,128]{1,0:T(1,128)}', space=vmem, size = 0x200, scoped, tag = 'scratch operand']
  #allocation5 [shape = 'f32[1,128]{1,0:T(1,128)}', space=vmem, size = 0x200, scoped, tag = 'scratch operand']
  %s0 = inlined_call_operand.hbm [shape: f32[2,32,128], index: 0, kind: input, shape index: {}]
  %s1 = inlined_call_operand.hbm [shape: f32[2,32,128], index: 1, kind: input, shape index: {}]
  %s2 = inlined_call_operand.hbm [shape: f32[2,8,128], index: 2, kind: output, shape index: {}]
  %s3 = sld [smem:[#allocation0]]
  $region57: #{tpu_custom_call.1} parent=0
    _
  %s5 = ssub.s32 1, %s3
  %s6 = scalar_select 0, %s5, %s3
  $region1: #{tpu_custom_call.1} parent=0
    #allocation6 [shape = 'u8[32768]{0}', space=vmem, size = 0x8000, scoped, tag = 'input window, operand 0']
    #allocation7 [shape = 's32[2]{0}', space=sflag, size = 0x8, scoped, tag = 'scoped memory for tpu_custom_call.1']
    #allocation8 [shape = 's32[2]{0}', space=sflag, size = 0x8, scoped, tag = 'scoped memory for tpu_custom_call.1']
    #allocation9 [shape = 'u8[32768]{0}', space=vmem, size = 0x8000, scoped, tag = 'input window, operand 1']
    #allocation10 [shape = 's32[2]{0}', space=sflag, size = 0x8, scoped, tag = 'scoped memory for tpu_custom_call.1']
    #allocation11 [shape = 'u8[8192]{0}', space=vmem, size = 0x2000, scoped, tag = 'output window, operand 0']
    %7 = vsyncpa [#allocation7], 0
    %s8 = scalar_lea.sflag [#allocation7], 1
    %9 = vsyncpa %s8, 0
    %10 = vsyncpa [#allocation10], 0
    %s11 = scalar_lea.sflag [#allocation10], 1
    %12 = vsyncpa %s11, 0
    %13 = vsyncpa [#allocation8], 0
    %s14 = scalar_lea.sflag [#allocation8], 1
    %15 = vsyncpa %s14, 0
    loop: start=0, step=1, limit=4
    $region2: #{tpu_custom_call.1} parent=1 // loop_pre_header
      _
    $region3: #{tpu_custom_call.1} parent=1 // loop_header
      %s17 = sphi 0, %s21
      %p18 = scmp.ge.s32.totalorder %s17, 4
      %s24 = sphi 0, %s36
      %s25 = sphi 0, %s32
      %s26 = sphi 0, %s24
      %s27 = sphi 0, %s25
      %s28 = sphi 0, %s26
      %s29 = sphi 0, %s27
      %s41 = sphi 0, %s43
      %s44 = sphi 0, %s41
      %s45 = sphi 0, %s44
      %s61 = sphi 0, %s45
      %s69 = sphi 0, %s71
      %s72 = sphi 0, %s69
      %s73 = sphi 0, %s72
      %s89 = sphi 0, %s73
      %s95 = sphi 0, %s97
      %s98 = sphi 0, %s95
      %s99 = sphi 0, %s98
      %s115 = sphi 0, %s99
    $region4: #{tpu_custom_call.1} parent=1 // loop_header_branch
      %20 = sbr.rel (%p18) target = $region8
    $region5: #{tpu_custom_call.1} parent=1 // loop_body
      %s22 = ssub.s32 %s17, 1
      %s23 = ssub.s32 %s17, 2
      %s30 = sadd.s32 1, %s25
      %p31 = scmp.ge.s32.totalorder %s30, 1
      %s32 = scalar_select %p31, 0, %s30
      %s33 = sadd.s32 1, %s24
      %s34 = scalar_select %p31, %s33, %s24
      %p35 = scmp.ge.s32.totalorder %s34, 2
      %s36 = scalar_select %p35, 0, %s34
      %s37 = ssub.s32 %s24, %s36
      %s38 = ssub.s32 %s25, %s32
      %s39 = sor.u32 %s37, %s38
      %p40 = scmp.eq.s32.totalorder %s39, 0
      %s42 = sadd.s32 %s41, 1
      %s43 = scalar_select %p40, %s41, %s42
      %p46 = pneg %p40
      %p47 = scmp.eq.s32.totalorder %s17, 1
      %p48 = por %p46, %p47
      %p49 = scmp.ne.s32.totalorder %s41, %s44
      %p50 = scmp.eq.s32.totalorder %s17, 0
      %p51 = por %p49, %p50
      %p52 = scmp.ne.s32.totalorder %s41, %s44
      %p53 = scmp.eq.s32.totalorder %s22, 1
      %p54 = por %p52, %p53
      %p55 = scmp.ne.s32.totalorder %s44, %s45
      %p56 = scmp.eq.s32.totalorder %s22, 0
      %p57 = por %p55, %p56
      %p58 = scmp.ne.s32.totalorder %s44, %s45
      %p59 = scmp.eq.s32.totalorder %s23, 1
      %p60 = por %p58, %p59
      %p62 = scmp.ne.s32.totalorder %s45, %s61
      %p63 = scmp.eq.s32.totalorder %s23, 0
      %p64 = por %p62, %p63
      %s65 = ssub.s32 %s24, %s36
      %s66 = ssub.s32 %s25, %s32
      %s67 = sor.u32 %s65, %s66
      %p68 = scmp.eq.s32.totalorder %s67, 0
      %s70 = sadd.s32 %s69, 1
      %s71 = scalar_select %p68, %s69, %s70
      %p74 = pneg %p68
      %p75 = scmp.eq.s32.totalorder %s17, 1
      %p76 = por %p74, %p75
      %p77 = scmp.ne.s32.totalorder %s69, %s72
      %p78 = scmp.eq.s32.totalorder %s17, 0
      %p79 = por %p77, %p78
      %p80 = scmp.ne.s32.totalorder %s69, %s72
      %p81 = scmp.eq.s32.totalorder %s22, 1
      %p82 = por %p80, %p81
      %p83 = scmp.ne.s32.totalorder %s72, %s73
      %p84 = scmp.eq.s32.totalorder %s22, 0
      %p85 = por %p83, %p84
      %p86 = scmp.ne.s32.totalorder %s72, %s73
      %p87 = scmp.eq.s32.totalorder %s23, 1
      %p88 = por %p86, %p87
      %p90 = scmp.ne.s32.totalorder %s73, %s89
      %p91 = scmp.eq.s32.totalorder %s23, 0
      %p92 = por %p90, %p91
      %s93 = ssub.s32 %s24, %s36
      %p94 = scmp.eq.s32.totalorder %s93, 0
      %s96 = sadd.s32 %s95, 1
      %s97 = scalar_select %p94, %s95, %s96
      %p100 = pneg %p94
      %p101 = scmp.eq.s32.totalorder %s17, 1
      %p102 = por %p100, %p101
      %p103 = scmp.ne.s32.totalorder %s95, %s98
      %p104 = scmp.eq.s32.totalorder %s17, 0
      %p105 = por %p103, %p104
      %p106 = scmp.ne.s32.totalorder %s95, %s98
      %p107 = scmp.eq.s32.totalorder %s22, 1
      %p108 = por %p106, %p107
      %p109 = scmp.ne.s32.totalorder %s98, %s99
      %p110 = scmp.eq.s32.totalorder %s22, 0
      %p111 = por %p109, %p110
      %p112 = scmp.ne.s32.totalorder %s98, %s99
      %p113 = scmp.eq.s32.totalorder %s23, 1
      %p114 = por %p112, %p113
      %p116 = scmp.ne.s32.totalorder %s99, %s115
      %p117 = scmp.eq.s32.totalorder %s23, 0
      %p118 = por %p116, %p117
      %p119 = scmp.le.s32.totalorder 1, %s17
      %p120 = scmp.lt.s32.totalorder %s17, 3
      %p121 = pnand %p119, %p120
      %p122 = pneg %p121
      // Predicated region
      $region9: #{tpu_custom_call.1} parent=5 // pred_check
        _
      $region10: #{tpu_custom_call.1} parent=5 // pred_check_branch
        %124 = sbr.rel (%p121) target = $region12
      $region11: #{tpu_custom_call.1} parent=5 // pred_region
        %s125 = ssub.s32 %s17, 1
      $region12: #{tpu_custom_call.1} parent=5 // pred_fallthru
        _
      %p126 = scmp.lt.s32.totalorder %s17, 2
      // Predicated region
      $region13: #{tpu_custom_call.1} parent=5 // pred_check
        %p127 = pneg %p126
      $region14: #{tpu_custom_call.1} parent=5 // pred_check_branch
        %129 = sbr.rel (%p127) target = $region16
      $region15: #{tpu_custom_call.1} parent=5 // pred_region
        // Predicated region
        $region17: #{tpu_custom_call.1} parent=15 // pred_check
          %p130 = pneg %p51
        $region18: #{tpu_custom_call.1} parent=15 // pred_check_branch
          %132 = sbr.rel (%p130) target = $region20
        $region19: #{tpu_custom_call.1} parent=15 // pred_region
          %s133 = sand.u32 %s41, 1
          %s134 = scalar_lea.sflag [#allocation7], %s133
          %s135 = sand.u32 %s41, 1
          %s136 = smul.addr %s135, 32
          %s137 = scalar_lea.vmem [#allocation6], %s136
          %s138 = smul.u32 4, %s25
          %s140 = ssub.s32 512, 512
          %141 = vsyncadd %s134, %s140
          %s142 = smul.addr %s24, 4
          %s143 = sadd.s32 %s138, %s142
          %s144 = smul.addr %s143, 128
          %s145 = scalar_lea.hbm %s0, %s144
          %s146 = sshll.u32 %s137, 4
          %s147 = int_to_ptr.vmem [resolvable:$true] %s146
          %152 = dma.hbm_to_vmem [thread:$0]  %s145, 512, %s147, %s134, 128, 128, 8
        $region20: #{tpu_custom_call.1} parent=15 // pred_fallthru
          _
        // Predicated region
        $region21: #{tpu_custom_call.1} parent=15 // pred_check
          %p153 = pneg %p79
        $region22: #{tpu_custom_call.1} parent=15 // pred_check_branch
          %155 = sbr.rel (%p153) target = $region24
        $region23: #{tpu_custom_call.1} parent=15 // pred_region
          %s156 = sand.u32 %s69, 1
          %s157 = scalar_lea.sflag [#allocation10], %s156
          %s158 = sand.u32 %s69, 1
          %s159 = smul.addr %s158, 32
          %s160 = scalar_lea.vmem [#allocation9], %s159
          %s161 = smul.u32 4, %s25
          %s163 = ssub.s32 512, 512
          %164 = vsyncadd %s157, %s163
          %s165 = smul.addr %s24, 4
          %s166 = sadd.s32 %s161, %s165
          %s167 = smul.addr %s166, 128
          %s168 = scalar_lea.hbm %s1, %s167
          %s169 = sshll.u32 %s160, 4
          %s170 = int_to_ptr.vmem [resolvable:$true] %s169
          %175 = dma.hbm_to_vmem [thread:$0]  %s168, 512, %s170, %s157, 128, 128, 8
        $region24: #{tpu_custom_call.1} parent=15 // pred_fallthru
          _
      $region16: #{tpu_custom_call.1} parent=5 // pred_fallthru
        _
      %p176 = scmp.le.s32.totalorder 1, %s17
      %p177 = scmp.lt.s32.totalorder %s17, 3
      %p178 = pnand %p176, %p177
      %p179 = pneg %p178
      // Predicated region
      $region25: #{tpu_custom_call.1} parent=5 // pred_check
        _
      $region26: #{tpu_custom_call.1} parent=5 // pred_check_branch
        %181 = sbr.rel (%p178) target = $region28
      $region27: #{tpu_custom_call.1} parent=5 // pred_region
        %s182 = ssub.s32 %s17, 1
        %s183 = sand.u32 %s44, 1
        %s184 = scalar_lea.sflag [#allocation7], %s183
        %s185 = sand.u32 %s44, 1
        %s186 = smul.addr %s185, 32
        %s187 = scalar_lea.vmem [#allocation6], %s186
        // Predicated region
        $region29: #{tpu_custom_call.1} parent=27 // pred_check
          %p188 = pneg %p57
        $region30: #{tpu_custom_call.1} parent=27 // pred_check_branch
          %190 = sbr.rel (%p188) target = $region32
        $region31: #{tpu_custom_call.1} parent=27 // pred_region
          %191 = dma.done %s184, 512
        $region32: #{tpu_custom_call.1} parent=27 // pred_fallthru
          _
        %s192 = sand.u32 %s72, 1
        %s193 = scalar_lea.sflag [#allocation10], %s192
        %s194 = sand.u32 %s72, 1
        %s195 = smul.addr %s194, 32
        %s196 = scalar_lea.vmem [#allocation9], %s195
        // Predicated region
        $region33: #{tpu_custom_call.1} parent=27 // pred_check
          %p197 = pneg %p85
        $region34: #{tpu_custom_call.1} parent=27 // pred_check_branch
          %199 = sbr.rel (%p197) target = $region36
        $region35: #{tpu_custom_call.1} parent=27 // pred_region
          %200 = dma.done %s193, 512
        $region36: #{tpu_custom_call.1} parent=27 // pred_fallthru
          _
        %s201 = sand.u32 %s44, 1
        %s202 = scalar_lea.sflag [#allocation7], %s201
        %s203 = sand.u32 %s44, 1
        %s204 = smul.addr %s203, 32
        %s205 = scalar_lea.vmem [#allocation6], %s204
        %p206 = pneg %p57
        %p207 = pneg %p54
        %s208 = sand.u32 %s72, 1
        %s209 = scalar_lea.sflag [#allocation10], %s208
        %s210 = sand.u32 %s72, 1
        %s211 = smul.addr %s210, 32
        %s212 = scalar_lea.vmem [#allocation9], %s211
        %p213 = pneg %p85
        %p214 = pneg %p82
        %p215 = pneg %p111
        %p216 = pneg %p108
        %s217 = sand.u32 %s98, 1
        %s218 = scalar_lea.sflag [#allocation8], %s217
        %s219 = sand.u32 %s98, 1
        %s220 = smul.addr %s219, 8
        %s221 = scalar_lea.vmem [#allocation11], %s220
        %s222 = smul.u32 4, %s27
        %s223 = smul.u32 4, %s27
        %p224 = scmp.eq.s32.totalorder %s27, 0
        // Predicated region
        $region37: #{tpu_custom_call.1} parent=27 // pred_check
          %p225 = pneg %p224
        $region38: #{tpu_custom_call.1} parent=27 // pred_check_branch
          %227 = sbr.rel (%p225) target = $region40
        $region39: #{tpu_custom_call.1} parent=27 // pred_region
          %228 = vst [vmem:[#allocation2] sm:$0x1] 0.0
          %229 = vst [vmem:[#allocation3] sm:$0x1] 0.0
          %230 = vst [vmem:[#allocation4] sm:$0x1] 0.0
          %231 = vst [vmem:[#allocation5] sm:$0x1] 0.0
        $region40: #{tpu_custom_call.1} parent=27 // pred_fallthru
          _
        %v232 = vld [vmem:[%s187] sm:$0xff]
        %v233 = vld [vmem:[%s187 + $0x8] sm:$0xff]
        %v234 = vld [vmem:[%s187 + $0x10] sm:$0xff]
        %v235 = vld [vmem:[%s187 + $0x18] sm:$0xff]
        %v236 = vld [vmem:[%s196] sm:$0xff]
        %v237 = vld [vmem:[%s196 + $0x8] sm:$0xff]
        %v238 = vld [vmem:[%s196 + $0x10] sm:$0xff]
        %v239 = vld [vmem:[%s196 + $0x18] sm:$0xff]
        %v240 = vld [vmem:[#allocation2] sm:$0x1]
        %v241 = vmul.f32 %v232, %v236
        %v242 = vmul.f32 %v233, %v237
        %v243 = vmul.f32 %v234, %v238
        %v244 = vmul.f32 %v235, %v239
        %v245 = vadd.f32 %v241, %v242
        %v246 = vadd.f32 %v245, %v243
        %v247 = vadd.f32 %v246, %v244
        %v248 = vrot.slane %v247, 4
        %v249 = vadd.f32 %v247, %v248
        %v250 = vrot.slane %v249, 2
        %v251 = vadd.f32 %v249, %v250
        %v252 = vrot.slane %v251, 1
        %v253 = vadd.f32 %v251, %v252
        %v254 = vadd.f32 %v240, %v253
        %255 = vst [vmem:[#allocation2] sm:$0x1] %v254
        %v256 = vld [vmem:[#allocation3] sm:$0x1]
        %v257 = vadd.f32 %v232, %v233
        %v258 = vadd.f32 %v257, %v234
        %v259 = vadd.f32 %v258, %v235
        %v260 = vrot.slane %v259, 4
        %v261 = vadd.f32 %v259, %v260
        %v262 = vrot.slane %v261, 2
        %v263 = vadd.f32 %v261, %v262
        %v264 = vrot.slane %v263, 1
        %v265 = vadd.f32 %v263, %v264
        %v266 = vadd.f32 %v256, %v265
        %267 = vst [vmem:[#allocation3] sm:$0x1] %v266
        %v268 = vld [vmem:[#allocation4] sm:$0x1]
        %v269 = vadd.f32 %v236, %v237
        %v270 = vadd.f32 %v269, %v238
        %v271 = vadd.f32 %v270, %v239
        %v272 = vrot.slane %v271, 4
        %v273 = vadd.f32 %v271, %v272
        %v274 = vrot.slane %v273, 2
        %v275 = vadd.f32 %v273, %v274
        %v276 = vrot.slane %v275, 1
        %v277 = vadd.f32 %v275, %v276
        %v278 = vadd.f32 %v268, %v277
        %279 = vst [vmem:[#allocation4] sm:$0x1] %v278
        %v280 = vmax.f32 %v232, 1e-07
        %v281 = vmax.f32 %v233, 1e-07
        %v282 = vmax.f32 %v234, 1e-07
        %v283 = vmax.f32 %v235, 1e-07
        %v284 = vmin.f32 %v280, 0.9999999
        %v285 = vmin.f32 %v281, 0.9999999
        %v286 = vmin.f32 %v282, 0.9999999
        %v287 = vmin.f32 %v283, 0.9999999
        %v288 = vlog2.pop %v284
        %v289 = vmul.f32 %v288, 0.6931472
        %v290 = vlog2.pop %v285
        %v291 = vmul.f32 %v290, 0.6931472
        %v292 = vlog2.pop %v286
        %v293 = vmul.f32 %v292, 0.6931472
        %v294 = vlog2.pop %v287
        %v295 = vmul.f32 %v294, 0.6931472
        %v296 = vmul.f32 %v236, %v289
        %v297 = vmul.f32 %v237, %v291
        %v298 = vmul.f32 %v238, %v293
        %v299 = vmul.f32 %v239, %v295
        %v300 = vsub.f32 1.0, %v236
        %v301 = vsub.f32 1.0, %v237
        %v302 = vsub.f32 1.0, %v238
        %v303 = vsub.f32 1.0, %v239
        %v304 = vmul.f32 %v300, 0.5
        %v305 = vmul.f32 %v301, 0.5
        %v306 = vmul.f32 %v302, 0.5
        %v307 = vmul.f32 %v303, 0.5
        %v308 = vsub.f32 1.0, %v284
        %v309 = vsub.f32 1.0, %v285
        %v310 = vsub.f32 1.0, %v286
        %v311 = vsub.f32 1.0, %v287
        %v312 = vlog2.pop %v308
        %v313 = vmul.f32 %v312, 0.6931472
        %v314 = vlog2.pop %v309
        %v315 = vmul.f32 %v314, 0.6931472
        %v316 = vlog2.pop %v310
        %v317 = vmul.f32 %v316, 0.6931472
        %v318 = vlog2.pop %v311
        %v319 = vmul.f32 %v318, 0.6931472
        %v320 = vmul.f32 %v304, %v313
        %v321 = vmul.f32 %v305, %v315
        %v322 = vmul.f32 %v306, %v317
        %v323 = vmul.f32 %v307, %v319
        %v324 = vadd.f32 %v296, %v320
        %v325 = vadd.f32 %v297, %v321
        %v326 = vadd.f32 %v298, %v322
        %v327 = vadd.f32 %v299, %v323
        %v328 = vmul.f32 %v324, 0.5
        %v329 = vmul.f32 %v325, 0.5
        %v330 = vmul.f32 %v326, 0.5
        %v331 = vmul.f32 %v327, 0.5
        %v332 = vsub.f32 0.0, %v328
        %v333 = vsub.f32 0.0, %v329
        %v334 = vsub.f32 0.0, %v330
        %v335 = vsub.f32 0.0, %v331
        %s336 = smul.u32 %s27, 4096
        %v337 = vlaneseq
        %v338 = vshrl.u32 %v337, 7
        %v339 = vadd.s32 %v338, 8
        %v340 = vadd.s32 %v338, 16
        %v341 = vadd.s32 %v338, 24
        %v342 = vmul.u32 %v338, 128
        %v343 = vmul.u32 %v339, 128
        %v344 = vmul.u32 %v340, 128
        %v345 = vmul.u32 %v341, 128
        %v346 = vstv %s336
        %v347 = vadd.s32 %v346, %v342
        %v348 = vadd.s32 %v346, %v343
        %v349 = vadd.s32 %v346, %v344
        %v350 = vadd.s32 %v346, %v345
        %v351 = vlaneseq
        %v352 = vand.u32 %v351, 127
        %v353 = vadd.s32 %v347, %v352
        %v354 = vadd.s32 %v348, %v352
        %v355 = vadd.s32 %v349, %v352
        %v356 = vadd.s32 %v350, %v352
        %vm357 = vcmp.lt.s32.totalorder %v353, 1024
        %vm358 = vcmp.lt.s32.totalorder %v354, 1024
        %vm359 = vcmp.lt.s32.totalorder %v355, 1024
        %vm360 = vcmp.lt.s32.totalorder %v356, 1024
        %v361 = vsel %vm357, %v332, 0.0
        %v362 = vsel %vm358, %v333, 0.0
        %v363 = vsel %vm359, %v334, 0.0
        %v364 = vsel %vm360, %v335, 0.0
        %v365 = vld [vmem:[#allocation5] sm:$0x1]
        %v366 = vadd.f32 %v361, %v362
        %v367 = vadd.f32 %v366, %v363
        %v368 = vadd.f32 %v367, %v364
        %v369 = vrot.slane %v368, 4
        %v370 = vadd.f32 %v368, %v369
        %v371 = vrot.slane %v370, 2
        %v372 = vadd.f32 %v370, %v371
        %v373 = vrot.slane %v372, 1
        %v374 = vadd.f32 %v372, %v373
        %v375 = vadd.f32 %v365, %v374
        %376 = vst [vmem:[#allocation5] sm:$0x1] %v375
        // Predicated region
        $region41: #{tpu_custom_call.1} parent=27 // pred_check
          %p377 = pneg %p224
        $region42: #{tpu_custom_call.1} parent=27 // pred_check_branch
          %379 = sbr.rel (%p377) target = $region44
        $region43: #{tpu_custom_call.1} parent=27 // pred_region
          %v380 = vld [vmem:[#allocation2] sm:$0x1]
          %381 = vst [vmem:[%s221] sm:$0x1] %v380
          %v382 = vld [vmem:[#allocation3] sm:$0x1]
          %383 = vst [vmem:[%s221 + $0x1] sm:$0x1] %v382
          %v384 = vld [vmem:[#allocation4] sm:$0x1]
          %385 = vst [vmem:[%s221 + $0x2] sm:$0x1] %v384
          %v386 = vld [vmem:[#allocation5] sm:$0x1]
          %387 = vst [vmem:[%s221 + $0x3] sm:$0x1] %v386
          %388 = vst [vmem:[%s221 + $0x4] sm:$0xf] 0.0
        $region44: #{tpu_custom_call.1} parent=27 // pred_fallthru
          _
        %s389 = sand.u32 %s98, 1
        %s390 = scalar_lea.sflag [#allocation8], %s389
        %s391 = sand.u32 %s98, 1
        %s392 = smul.addr %s391, 8
        %s393 = scalar_lea.vmem [#allocation11], %s392
        // Predicated region
        $region45: #{tpu_custom_call.1} parent=27 // pred_check
          %p394 = pneg %p108
        $region46: #{tpu_custom_call.1} parent=27 // pred_check_branch
          %396 = sbr.rel (%p394) target = $region48
        $region47: #{tpu_custom_call.1} parent=27 // pred_region
          %s398 = ssub.s32 128, 128
          %399 = vsyncadd %s390, %s398
          %s400 = smul.addr %s26, 128
          %s401 = scalar_lea.hbm %s2, %s400
          %s403 = sshll.u32 %s393, 4
          %s404 = int_to_ptr.vmem [resolvable:$true] %s403
          %406 = dma.vmem_to_hbm [thread:$0]  %s404, 128, %s401, %s390
        $region48: #{tpu_custom_call.1} parent=27 // pred_fallthru
          _
      $region28: #{tpu_custom_call.1} parent=5 // pred_fallthru
        _
      %p407 = scmp.le.s32.totalorder 2, %s17
      // Predicated region
      $region49: #{tpu_custom_call.1} parent=5 // pred_check
        %p408 = pneg %p407
      $region50: #{tpu_custom_call.1} parent=5 // pred_check_branch
        %410 = sbr.rel (%p408) target = $region52
      $region51: #{tpu_custom_call.1} parent=5 // pred_region
        %s411 = ssub.s32 %s17, 2
        // Predicated region
        $region53: #{tpu_custom_call.1} parent=51 // pred_check
          %p412 = pneg %p114
        $region54: #{tpu_custom_call.1} parent=51 // pred_check_branch
          %414 = sbr.rel (%p412) target = $region56
        $region55: #{tpu_custom_call.1} parent=51 // pred_region
          %s415 = sand.u32 %s99, 1
          %s416 = scalar_lea.sflag [#allocation8], %s415
          %s417 = sand.u32 %s99, 1
          %s418 = smul.addr %s417, 8
          %s419 = scalar_lea.vmem [#allocation11], %s418
          %420 = dma.done %s416, 128
        $region56: #{tpu_custom_call.1} parent=51 // pred_fallthru
          _
      $region52: #{tpu_custom_call.1} parent=5 // pred_fallthru
        _
    $region6: #{tpu_custom_call.1} parent=1 // loop_footer
      %s21 = sadd.s32 1, %s17
    $region7: #{tpu_custom_call.1} parent=1 // loop_footer_branch
      %16 = sbr.rel target = $region3
    $region8: #{tpu_custom_call.1} parent=1 // loop_exit
      _
    %421 = vsyncpa [#allocation7], 1
    %s422 = scalar_lea.sflag [#allocation7], 1
    %423 = vsyncpa %s422, 1
    %424 = vsyncpa [#allocation10], 1
    %s425 = scalar_lea.sflag [#allocation10], 1
    %426 = vsyncpa %s425, 1
    %427 = vsyncpa [#allocation8], 1
    %s428 = scalar_lea.sflag [#allocation8], 1
    %429 = vsyncpa %s428, 1

</llo_original>
